<compile_context>
chip_gen: v7x
topology: tpu7x:2x2x1
jax: 0.10.0
libtpu: 0.0.40
codegen_flags: <defaults>
</compile_context>

<pallas_src>
import functools

import jax
import jax.numpy as jnp
from jax.experimental import pallas as pl
from jax.experimental.pallas import tpu as pltpu


# ----------------------------- fused single-pass kernel -----------------------------

def _se_fused_kernel(x_ref, w1t_ref, w2t_ref, o_ref, *, inv_hw):
    # x_ref: (Bt, C, HW)   w1t_ref: (C, Cr) f32   w2t_ref: (Cr, C) f32   o_ref: (Bt, C, HW)
    x = x_ref[...]

    # Global average pool over spatial, accumulating in f32 (no full f32 block copy).
    pooled = jnp.sum(x, axis=-1, dtype=jnp.float32) * inv_hw            # (Bt, C)

    # fc1 -> relu  (weights pre-transposed in the wrapper: MXU-native contraction)
    h = jnp.dot(pooled, w1t_ref[...], preferred_element_type=jnp.float32)  # (Bt, Cr)
    h = jnp.maximum(h, 0.0)

    # fc2 -> sigmoid
    s = jnp.dot(h, w2t_ref[...], preferred_element_type=jnp.float32)       # (Bt, C)
    s = jax.nn.sigmoid(s)

    # Scale input: per-(batch, channel) factor broadcast along lanes (HW).
    o_ref[...] = x * s.astype(x.dtype)[:, :, None]


# ----------------------- two-pass fallback (large C*HW blocks) -----------------------

def _se_pool_fc_kernel(x_ref, w1t_ref, w2t_ref, s_ref, acc_ref, *,
                       inv_hw, hw, ht, mask_tail):
    # x_ref: (1, C, Ht)  s_ref: (1, C, 1) f32  acc_ref: (1, C) f32 scratch
    h_idx = pl.program_id(1)

    @pl.when(h_idx == 0)
    def _init():
        acc_ref[...] = jnp.zeros_like(acc_ref)

    x = x_ref[...]
    if mask_tail:
        # Last HW block may be partial; mask out-of-range lanes (padding is unspecified).
        lane = jax.lax.broadcasted_iota(jnp.int32, x.shape, 2)
        x = jnp.where(h_idx * ht + lane < hw, x, jnp.zeros_like(x))
    acc_ref[...] += jnp.sum(x, axis=-1, dtype=jnp.float32)              # (1, C)

    @pl.when(h_idx == pl.num_programs(1) - 1)
    def _finish():
        pooled = acc_ref[...] * inv_hw                                  # (1, C)
        h = jnp.maximum(
            jnp.dot(pooled, w1t_ref[...], preferred_element_type=jnp.float32), 0.0)
        s = jax.nn.sigmoid(
            jnp.dot(h, w2t_ref[...], preferred_element_type=jnp.float32))
        s_ref[...] = s[:, :, None]                                      # (1, C, 1)


def _se_scale_kernel(x_ref, s_ref, o_ref):
    # x_ref/o_ref: (1, C, Ht)   s_ref: (1, C, 1) f32
    x = x_ref[...]
    o_ref[...] = x * s_ref[...].astype(x.dtype)


# ------------------------------------ heuristics ------------------------------------

def _device_heuristics():
    """Return (block_target_bytes, vmem_limit_bytes, tensorcores_per_chip)."""
    target, vmem_limit, cores = 8 << 20, 48 << 20, 1
    try:
        kind = jax.devices()[0].device_kind.lower()
    except Exception:
        kind = ""
    if "v7" in kind:
        target, vmem_limit, cores = 6 << 20, 48 << 20, 2     # 64 MiB VMEM / TC, 2 TCs
    elif "v6" in kind:
        target, vmem_limit, cores = 12 << 20, 64 << 20, 1    # 128 MiB VMEM
    elif "v5" in kind:
        target, vmem_limit, cores = 6 << 20, 48 << 20, 1     # scoped default is small; raise it
    return target, vmem_limit, cores


def _choose_bt(B, bytes_per_batch, target, cores):
    """Batch tile: ~target-sized block, divides B; >=2 steps/core only on multi-TC parts."""
    bt = int(max(1, min(B, target // max(bytes_per_batch, 1))))
    if cores >= 2:
        min_steps = 2 * cores
        while bt > 1 and B >= min_steps and pl.cdiv(B, bt) < min_steps:
            bt -= 1
    while B % bt != 0:
        bt -= 1
    return bt


def _choose_ht(HW, C, itemsize, target):
    """Spatial tile for the fallback path: multiple of 128 (or full HW)."""
    ht = (target // max(C * itemsize, 1)) // 128 * 128
    ht = max(ht, 128)
    return HW if ht >= HW else ht


# ------------------------------------- wrapper --------------------------------------

def squeeze_excite(x_nchw, w1, w2, *, _force_two_pass=False, _block_target_bytes=None):
    """Squeeze-Excite forward.

    x_nchw: (B, C, H, W).  w1: (C//r, C), w2: (C, C//r)  (PyTorch Linear layout, no bias).
    """
    B, C, H, W = x_nchw.shape
    HW = H * W
    Cr = w1.shape[0]
    dtype = x_nchw.dtype
    itemsize = jnp.dtype(dtype).itemsize

    target, vmem_limit, cores = _device_heuristics()
    if _block_target_bytes is not None:
        target = int(_block_target_bytes)

    x = x_nchw.reshape(B, C, HW)

    # Weights kept f32 (tiny; DMA'd once), pre-transposed for MXU-native contractions.
    w1t = w1.astype(jnp.float32).T                                   # (C, Cr)
    w2t = w2.astype(jnp.float32).T                                   # (Cr, C)
    weight_bytes = (w1t.size + w2t.size) * 4

    inv_hw = 1.0 / float(HW)
    bytes_per_batch = C * HW * itemsize

    # Fused path footprint ~ double-buffered input + output blocks (Bt >= 1) + weights.
    fits_fused = (4 * bytes_per_batch + weight_bytes) <= int(0.8 * vmem_limit)

    if fits_fused and not _force_two_pass:
        Bt = _choose_bt(B, bytes_per_batch, target, cores)
        grid = (B // Bt,)
        out = pl.pallas_call(
            functools.partial(_se_fused_kernel, inv_hw=inv_hw),
            out_shape=jax.ShapeDtypeStruct((B, C, HW), dtype),
            grid_spec=pltpu.PrefetchScalarGridSpec(
                num_scalar_prefetch=0,
                grid=grid,
                in_specs=[
                    pl.BlockSpec((Bt, C, HW), lambda b: (b, 0, 0)),
                    pl.BlockSpec((C, Cr), lambda b: (0, 0)),
                    pl.BlockSpec((Cr, C), lambda b: (0, 0)),
                ],
                out_specs=pl.BlockSpec((Bt, C, HW), lambda b: (b, 0, 0)),
            ),
            compiler_params=pltpu.CompilerParams(
                dimension_semantics=("parallel",),
                vmem_limit_bytes=vmem_limit,
            ),
            cost_estimate=pl.CostEstimate(
                flops=2 * B * C * HW + 4 * B * C * Cr,
                transcendentals=B * C,
                bytes_accessed=2 * B * C * HW * itemsize + weight_bytes,
            ),
        )(x, w1t, w2t)
        return out.reshape(B, C, H, W)

    # ---- two-pass fallback: (pool + FC + sigmoid) kernel, then scale-apply kernel ----
    Ht = _choose_ht(HW, C, itemsize, target)
    Nh = pl.cdiv(HW, Ht)
    mask_tail = (HW % Ht) != 0

    scale = pl.pallas_call(
        functools.partial(_se_pool_fc_kernel, inv_hw=inv_hw, hw=HW, ht=Ht,
                          mask_tail=mask_tail),
        out_shape=jax.ShapeDtypeStruct((B, C, 1), jnp.float32),
        grid_spec=pltpu.PrefetchScalarGridSpec(
            num_scalar_prefetch=0,
            grid=(B, Nh),
            in_specs=[
                pl.BlockSpec((1, C, Ht), lambda b, h: (b, 0, h)),
                pl.BlockSpec((C, Cr), lambda b, h: (0, 0)),
                pl.BlockSpec((Cr, C), lambda b, h: (0, 0)),
            ],
            out_specs=pl.BlockSpec((1, C, 1), lambda b, h: (b, 0, 0)),
            scratch_shapes=[pltpu.VMEM((1, C), jnp.float32)],
        ),
        compiler_params=pltpu.CompilerParams(
            dimension_semantics=("parallel", "arbitrary"),
            vmem_limit_bytes=vmem_limit,
        ),
        cost_estimate=pl.CostEstimate(
            flops=B * C * HW + 4 * B * C * Cr,
            transcendentals=B * C,
            bytes_accessed=B * C * HW * itemsize + weight_bytes + B * C * 4,
        ),
    )(x, w1t, w2t)

    out = pl.pallas_call(
        _se_scale_kernel,
        out_shape=jax.ShapeDtypeStruct((B, C, HW), dtype),
        grid_spec=pltpu.PrefetchScalarGridSpec(
            num_scalar_prefetch=0,
            grid=(B, Nh),
            in_specs=[
                pl.BlockSpec((1, C, Ht), lambda b, h: (b, 0, h)),
                pl.BlockSpec((1, C, 1), lambda b, h: (b, 0, 0)),
            ],
            out_specs=pl.BlockSpec((1, C, Ht), lambda b, h: (b, 0, h)),
        ),
        compiler_params=pltpu.CompilerParams(
            dimension_semantics=("parallel", "parallel"),
            vmem_limit_bytes=vmem_limit,
        ),
        cost_estimate=pl.CostEstimate(
            flops=B * C * HW,
            transcendentals=0,
            bytes_accessed=2 * B * C * HW * itemsize + B * C * 4,
        ),
    )(x, scale)
    return out.reshape(B, C, H, W)


# ------------------------------------ reference -------------------------------------

def _reference(x, w1, w2):
    y = jnp.mean(x.astype(jnp.float32), axis=(2, 3))              # (B, C)
    h = jnp.maximum(y @ w1.astype(jnp.float32).T, 0.0)            # (B, Cr)
    s = jax.nn.sigmoid(h @ w2.astype(jnp.float32).T)              # (B, C)
    return x * s.astype(x.dtype)[:, :, None, None]


def _make_case(key, B, C, H, W, reduction):
    Cr = max(C // reduction, 1)
    kx, k1, k2 = jax.random.split(key, 3)
    x = jax.random.normal(kx, (B, C, H, W), dtype=jnp.float32)
    w1 = jax.random.normal(k1, (Cr, C), dtype=jnp.float32) * (1.0 / jnp.sqrt(C))
    w2 = jax.random.normal(k2, (C, Cr), dtype=jnp.float32) * (1.0 / jnp.sqrt(Cr))
    return x, w1, w2


if __name__ == "__main__":
    key = jax.random.PRNGKey(0)
    k0, k1, k2 = jax.random.split(key, 3)

    # 1) Fused path, HW multiple of 128.
    x, w1, w2 = _make_case(k0, B=2, C=4, H=16, W=16, reduction=2)
    out = jax.block_until_ready(squeeze_excite(x, w1, w2))
    assert jnp.allclose(out, _reference(x, w1, w2), atol=1e-5, rtol=1e-5), "fused(256) mismatch"

    # 2) Fused path, HW NOT a multiple of 128 (no wrapper pad/slice; masked tail stores).
    x, w1, w2 = _make_case(k1, B=2, C=8, H=7, W=7, reduction=2)
    out = jax.block_until_ready(squeeze_excite(x, w1, w2))
    assert jnp.allclose(out, _reference(x, w1, w2), atol=1e-5, rtol=1e-5), "fused(49) mismatch"

    # 3) Two-pass fallback path (forced), with a partial trailing HW tile (169 % 128 != 0).
    x, w1, w2 = _make_case(k2, B=2, C=8, H=13, W=13, reduction=2)
    out = jax.block_until_ready(
        squeeze_excite(x, w1, w2, _force_two_pass=True, _block_target_bytes=4096))
    assert jnp.allclose(out, _reference(x, w1, w2), atol=1e-5, rtol=1e-5), "two-pass mismatch"

    print("KERNEL_OK")
</pallas_src>

<mosaic_0001>
module attributes {stable_mosaic.version = 11 : i64} {
  func.func @_se_fused_kernel(%arg0: i32, %arg1: memref<2x4x256xf32, #tpu.memory_space<vmem>>, %arg2: memref<4x2xf32, #tpu.memory_space<vmem>>, %arg3: memref<2x4xf32, #tpu.memory_space<vmem>>, %arg4: memref<2x4x256xf32, #tpu.memory_space<vmem>>) attributes {dimension_semantics = [#tpu.dimension_semantics<parallel>], iteration_bounds = array<i64: 1>, scalar_prefetch = 0 : i64, scratch_operands = 0 : i64, tpu.core_type = #tpu.core_type<tc>, window_params = [{transform_indices = @transform_0, window_bounds = array<i64: 2, 4, 256>}, {pipeline_mode = #tpu.pipeline_mode<synchronous>, transform_indices = @transform_1, window_bounds = array<i64: 4, 2>}, {pipeline_mode = #tpu.pipeline_mode<synchronous>, transform_indices = @transform_2, window_bounds = array<i64: 2, 4>}, {transform_indices = @transform_3, window_bounds = array<i64: 2, 4, 256>}]} {
    %c0 = arith.constant 0 : index
    %c0_0 = arith.constant 0 : index
    %c0_1 = arith.constant 0 : index
    %0 = vector.load %arg1[%c0, %c0_0, %c0_1] : memref<2x4x256xf32, #tpu.memory_space<vmem>>, vector<2x4x256xf32>
    %cst = arith.constant dense<0.000000e+00> : vector<2x4xf32>
    %1 = vector.multi_reduction <add>, %0, %cst [2] : vector<2x4x256xf32> to vector<2x4xf32>
    %cst_2 = arith.constant 3.906250e-03 : f32
    %2 = vector.broadcast %cst_2 : f32 to vector<2x4xf32>
    %3 = arith.mulf %1, %2 : vector<2x4xf32>
    %c0_3 = arith.constant 0 : index
    %c0_4 = arith.constant 0 : index
    %4 = vector.load %arg2[%c0_3, %c0_4] : memref<4x2xf32, #tpu.memory_space<vmem>>, vector<4x2xf32>
    %cst_5 = arith.constant dense<0.000000e+00> : vector<2x2xf32>
    %5 = tpu.matmul %3, %4, %cst_5 {dimension_numbers = #tpu.dot_dimension_numbers<[1], [0], [0], [1], [0, 0, 1, 1], [], []>} : vector<2x4xf32>, vector<4x2xf32>, vector<2x2xf32> -> vector<2x2xf32>
    %cst_6 = arith.constant 0.000000e+00 : f32
    %6 = vector.broadcast %cst_6 : f32 to vector<2x2xf32>
    %7 = arith.maximumf %5, %6 : vector<2x2xf32>
    %c0_7 = arith.constant 0 : index
    %c0_8 = arith.constant 0 : index
    %8 = vector.load %arg3[%c0_7, %c0_8] : memref<2x4xf32, #tpu.memory_space<vmem>>, vector<2x4xf32>
    %cst_9 = arith.constant dense<0.000000e+00> : vector<2x4xf32>
    %9 = tpu.matmul %7, %8, %cst_9 {dimension_numbers = #tpu.dot_dimension_numbers<[1], [0], [0], [1], [0, 0, 1, 1], [], []>} : vector<2x2xf32>, vector<2x4xf32>, vector<2x4xf32> -> vector<2x4xf32>
    %10 = arith.negf %9 : vector<2x4xf32>
    %11 = math.exp %10 : vector<2x4xf32>
    %cst_10 = arith.constant 1.000000e+00 : f32
    %12 = vector.broadcast %cst_10 : f32 to vector<2x4xf32>
    %13 = arith.addf %12, %11 : vector<2x4xf32>
    %14 = arith.divf %12, %13 : vector<2x4xf32>
    %15 = vector.shape_cast %14 : vector<2x4xf32> to vector<2x4x1xf32>
    %16 = vector.broadcast %15 : vector<2x4x1xf32> to vector<2x4x256xf32>
    %17 = arith.mulf %0, %16 : vector<2x4x256xf32>
    %c0_11 = arith.constant 0 : index
    %c0_12 = arith.constant 0 : index
    %c0_13 = arith.constant 0 : index
    %18 = vector.load %arg4[%c0_11, %c0_12, %c0_13] : memref<2x4x256xf32, #tpu.memory_space<vmem>>, vector<2x4x256xf32>
    tpu.vector_store %arg4[%c0_11, %c0_12, %c0_13], %17 {strides = array<i32>} : memref<2x4x256xf32, #tpu.memory_space<vmem>>, vector<2x4x256xf32>,
    return
  }
  func.func @transform_0(%arg0: i32) -> (i32, i32, i32) {
    %c0_i32 = arith.constant 0 : i32
    %c0_i32_0 = arith.constant 0 : i32
    %c0_i32_1 = arith.constant 0 : i32
    return %arg0, %c0_i32, %c0_i32_0 : i32, i32, i32
  }
  func.func @transform_1(%arg0: i32) -> (i32, i32) {
    %c0_i32 = arith.constant 0 : i32
    %c0_i32_0 = arith.constant 0 : i32
    %c0_i32_1 = arith.constant 0 : i32
    return %c0_i32, %c0_i32_0 : i32, i32
  }
  func.func @transform_2(%arg0: i32) -> (i32, i32) {
    %c0_i32 = arith.constant 0 : i32
    %c0_i32_0 = arith.constant 0 : i32
    %c0_i32_1 = arith.constant 0 : i32
    return %c0_i32, %c0_i32_0 : i32, i32
  }
  func.func @transform_3(%arg0: i32) -> (i32, i32, i32) {
    %c0_i32 = arith.constant 0 : i32
    %c0_i32_0 = arith.constant 0 : i32
    %c0_i32_1 = arith.constant 0 : i32
    return %arg0, %c0_i32, %c0_i32_0 : i32, i32, i32
  }
}

</mosaic_0001>

<llo_original>
// kernel: tpu_custom_call.1
$region0: #{tpu_custom_call.1}
  #allocation0 [shape = 'u32[]', space=smem, size = 0x4, offset = 0x4, fixed_abs, tag = 'smem constant byte address 0x4 - core index']
  #allocation1 [shape = 'u32[144,128]{1,0:T(1,128)}', space=vmem, size = 0x12000, scoped, tag = 'internal scratch']
  %s0 = inlined_call_operand.hbm [shape: f32[2,4,256], index: 0, kind: input, shape index: {}]
  %s1 = inlined_call_operand.vmem [shape: f32[4,2], index: 1, kind: input, shape index: {}]
  %s2 = inlined_call_operand.vmem [shape: f32[2,4], index: 2, kind: input, shape index: {}]
  %s3 = inlined_call_operand.hbm [shape: f32[2,4,256], index: 3, kind: output, shape index: {}]
  %s4 = sld [smem:[#allocation0]]
  $region26: #{tpu_custom_call.1} parent=0
    _
  %s6 = ssub.s32 1, %s4
  %s7 = scalar_select 0, %s6, %s4
  $region1: #{tpu_custom_call.1} parent=0
    #allocation2 [shape = 'u8[8192]{0}', space=vmem, size = 0x2000, scoped, tag = 'input window, operand 0, single buffered']
    #allocation3 [shape = 's32[1]{0}', space=sflag, size = 0x4, scoped, tag = 'scoped memory for tpu_custom_call.1']
    #allocation4 [shape = 's32[1]{0}', space=sflag, size = 0x4, scoped, tag = 'scoped memory for tpu_custom_call.1']
    #allocation5 [shape = 'u8[8192]{0}', space=vmem, size = 0x2000, scoped, tag = 'output window, operand 0, single buffered']
    %8 = vsyncpa [#allocation3], 0
    %9 = vsyncpa [#allocation4], 0
    // Predicated region
    $region2: #{tpu_custom_call.1} parent=1 // pred_check
      _
    $region3: #{tpu_custom_call.1} parent=1 // pred_check_branch
      %11 = sbr.rel (0) target = $region5
    $region4: #{tpu_custom_call.1} parent=1 // pred_region
      %s13 = ssub.s32 256, 256
      %14 = vsyncadd [#allocation3], %s13
      %s15 = sshll.u32 [#allocation2], 4
      %s16 = int_to_ptr.vmem [resolvable:$true] %s15
      %21 = dma.hbm_to_vmem [thread:$0]  %s0, 256, %s16, [#allocation3], 128, 128, 8
    $region5: #{tpu_custom_call.1} parent=1 // pred_fallthru
      _
    // Predicated region
    $region6: #{tpu_custom_call.1} parent=1 // pred_check
      _
    $region7: #{tpu_custom_call.1} parent=1 // pred_check_branch
      %23 = sbr.rel (0) target = $region9
    $region8: #{tpu_custom_call.1} parent=1 // pred_region
      _
    $region9: #{tpu_custom_call.1} parent=1 // pred_fallthru
      _
    // Predicated region
    $region10: #{tpu_custom_call.1} parent=1 // pred_check
      _
    $region11: #{tpu_custom_call.1} parent=1 // pred_check_branch
      %25 = sbr.rel (0) target = $region13
    $region12: #{tpu_custom_call.1} parent=1 // pred_region
      _
    $region13: #{tpu_custom_call.1} parent=1 // pred_fallthru
      _
    // Predicated region
    $region14: #{tpu_custom_call.1} parent=1 // pred_check
      _
    $region15: #{tpu_custom_call.1} parent=1 // pred_check_branch
      %27 = sbr.rel (0) target = $region17
    $region16: #{tpu_custom_call.1} parent=1 // pred_region
      %28 = dma.done [#allocation3], 256
    $region17: #{tpu_custom_call.1} parent=1 // pred_fallthru
      _
    %v29 = vld [vmem:[#allocation2] sm:$0xff]
    %v30 = vld [vmem:[#allocation2 + $0x8] sm:$0xff]
    %v33 = vcombine.high %v29, %v29
    %v34 = vcombine.high %v30, %v30
    %vm37 = vcmask 1043456
    %v38 = vsel %vm37, %v29, 0.0
    %v39 = vsel %vm37, %v33, 0.0
    %v40 = vadd.f32 %v38, %v39
    %41 = vadd.xlane.f32.xlu0 %v40
    %v42 = vpop.xlane.xlu0 %41
    %v43 = vsel %vm37, %v30, 0.0
    %v44 = vsel %vm37, %v34, 0.0
    %v45 = vadd.f32 %v43, %v44
    %46 = vadd.xlane.f32.xlu0 %v45
    %v47 = vpop.xlane.xlu0 %46
    %v48 = vmul.f32 %v42, 0.00390625
    %v49 = vmul.f32 %v47, 0.00390625
    %v50 = vld [vmem:[%s1] sm:$0xf]
    %v53 = vlaneseq
    %v54 = vand.u32 %v53, 127
    %v55 = vlaneseq
    %v56 = vshrl.u32 %v55, 7
    %v57 = vsub.s32 %v54, %v56
    %v58 = vrot.slane %v48, %v57
    %v59 = vlaneseq
    %v60 = vshrl.u32 %v59, 7
    %v61 = vsub.s32 %v54, %v60
    %v62 = vrot.slane %v49, %v61
    %vm63 = vcmask 1041409
    %v64 = vsel %vm63, %v62, %v58
    %vm65 = vcmask 31744
    %v66 = vsel %vm65, %v64, 0
    %v69 = vsel %vm37, %v50, 0
    %71 = vmatprep.subr.mxu0 0.0
    %72 = vmatpush1.msra.mxu0 %v69
    %73 = vmatprep.subr.mxu0 0.0
    %74 = vmatpush1.msra.mxu0 0.0
    %75 = vmatprep.subr.mxu0 0.0
    %76 = vmatpush1.msra.mxu0 0.0
    %77 = vmatprep.subr.mxu0 0.0
    %78 = vmatpush1.msra.mxu0 0.0
    %79 = vmatprep.subr.mxu0 0.0
    %80 = vmatpush1.msra.mxu0 0.0
    %81 = vmatprep.subr.mxu0 0.0
    %82 = vmatpush1.msra.mxu0 0.0
    %83 = vmatprep.subr.mxu0 0.0
    %84 = vmatpush1.msra.mxu0 0.0
    %85 = vmatprep.subr.mxu0 0.0
    %86 = vmatpush1.msra.mxu0 0.0
    %87 = vmatprep.subr.mxu0 0.0
    %88 = vmatpush1.msra.mxu0 0.0
    %89 = vmatprep.subr.mxu0 0.0
    %90 = vmatpush1.msra.mxu0 0.0
    %91 = vmatprep.subr.mxu0 0.0
    %92 = vmatpush1.msra.mxu0 0.0
    %93 = vmatprep.subr.mxu0 0.0
    %94 = vmatpush1.msra.mxu0 0.0
    %95 = vmatprep.subr.mxu0 0.0
    %96 = vmatpush1.msra.mxu0 0.0
    %97 = vmatprep.subr.mxu0 0.0
    %98 = vmatpush1.msra.mxu0 0.0
    %99 = vmatprep.subr.mxu0 0.0
    %100 = vmatpush1.msra.mxu0 0.0
    %101 = vmatprep.subr.mxu0 0.0
    %102 = vmatpush1.msra.mxu0 0.0
    %103 = vmatprep.subr.mxu0 0.0
    %104 = vmatpush1.msra.mxu0 0.0
    %105 = vmatprep.subr.mxu0 0.0
    %106 = vmatpush1.msra.mxu0 0.0
    %107 = vmatprep.subr.mxu0 0.0
    %108 = vmatpush1.msra.mxu0 0.0
    %109 = vmatprep.subr.mxu0 0.0
    %110 = vmatpush1.msra.mxu0 0.0
    %111 = vmatprep.subr.mxu0 0.0
    %112 = vmatpush1.msra.mxu0 0.0
    %113 = vmatprep.subr.mxu0 0.0
    %114 = vmatpush1.msra.mxu0 0.0
    %115 = vmatprep.subr.mxu0 0.0
    %116 = vmatpush1.msra.mxu0 0.0
    %117 = vmatprep.subr.mxu0 0.0
    %118 = vmatpush1.msra.mxu0 0.0
    %119 = vmatprep.subr.mxu0 0.0
    %120 = vmatpush1.msra.mxu0 0.0
    %121 = vmatprep.subr.mxu0 0.0
    %122 = vmatpush1.msra.mxu0 0.0
    %123 = vmatprep.subr.mxu0 0.0
    %124 = vmatpush1.msra.mxu0 0.0
    %125 = vmatprep.subr.mxu0 0.0
    %126 = vmatpush1.msra.mxu0 0.0
    %127 = vmatprep.subr.mxu0 0.0
    %128 = vmatpush1.msra.mxu0 0.0
    %129 = vmatprep.subr.mxu0 0.0
    %130 = vmatpush1.msra.mxu0 0.0
    %131 = vmatprep.subr.mxu0 0.0
    %132 = vmatpush1.msra.mxu0 0.0
    %133 = vmatprep.subr.mxu0 0.0
    %134 = vmatpush1.msra.mxu0 0.0
    %135 = vmatprep.mubr.f32.mxu0 0.0
    %136 = vmatmul.mubr.f32.gmra.mrb[0].mxu0 %v66
    %v137 = vpop.f32.mrb[0].mxu0
    %v138 = vadd.f32 0.0, %v137
    %v139 = vpop.f32.mrb[0].mxu0
    %140 = vdwg.mxu0
    %v141 = vmax.f32 %v138, 0.0
    %v142 = vld [vmem:[%s2] sm:$0x3]
    %vm143 = vcmask 15360
    %v145 = vsel %vm143, %v141, 0
    %vm147 = vcmask 1041408
    %v149 = vsel %vm147, %v142, 0
    %151 = vmatprep.subr.mxu0 0.0
    %152 = vmatpush1.msra.mxu0 %v149
    %153 = vmatprep.subr.mxu0 0.0
    %154 = vmatpush1.msra.mxu0 0.0
    %155 = vmatprep.subr.mxu0 0.0
    %156 = vmatpush1.msra.mxu0 0.0
    %157 = vmatprep.subr.mxu0 0.0
    %158 = vmatpush1.msra.mxu0 0.0
    %159 = vmatprep.subr.mxu0 0.0
    %160 = vmatpush1.msra.mxu0 0.0
    %161 = vmatprep.subr.mxu0 0.0
    %162 = vmatpush1.msra.mxu0 0.0
    %163 = vmatprep.subr.mxu0 0.0
    %164 = vmatpush1.msra.mxu0 0.0
    %165 = vmatprep.subr.mxu0 0.0
    %166 = vmatpush1.msra.mxu0 0.0
    %167 = vmatprep.subr.mxu0 0.0
    %168 = vmatpush1.msra.mxu0 0.0
    %169 = vmatprep.subr.mxu0 0.0
    %170 = vmatpush1.msra.mxu0 0.0
    %171 = vmatprep.subr.mxu0 0.0
    %172 = vmatpush1.msra.mxu0 0.0
    %173 = vmatprep.subr.mxu0 0.0
    %174 = vmatpush1.msra.mxu0 0.0
    %175 = vmatprep.subr.mxu0 0.0
    %176 = vmatpush1.msra.mxu0 0.0
    %177 = vmatprep.subr.mxu0 0.0
    %178 = vmatpush1.msra.mxu0 0.0
    %179 = vmatprep.subr.mxu0 0.0
    %180 = vmatpush1.msra.mxu0 0.0
    %181 = vmatprep.subr.mxu0 0.0
    %182 = vmatpush1.msra.mxu0 0.0
    %183 = vmatprep.subr.mxu0 0.0
    %184 = vmatpush1.msra.mxu0 0.0
    %185 = vmatprep.subr.mxu0 0.0
    %186 = vmatpush1.msra.mxu0 0.0
    %187 = vmatprep.subr.mxu0 0.0
    %188 = vmatpush1.msra.mxu0 0.0
    %189 = vmatprep.subr.mxu0 0.0
    %190 = vmatpush1.msra.mxu0 0.0
    %191 = vmatprep.subr.mxu0 0.0
    %192 = vmatpush1.msra.mxu0 0.0
    %193 = vmatprep.subr.mxu0 0.0
    %194 = vmatpush1.msra.mxu0 0.0
    %195 = vmatprep.subr.mxu0 0.0
    %196 = vmatpush1.msra.mxu0 0.0
    %197 = vmatprep.subr.mxu0 0.0
    %198 = vmatpush1.msra.mxu0 0.0
    %199 = vmatprep.subr.mxu0 0.0
    %200 = vmatpush1.msra.mxu0 0.0
    %201 = vmatprep.subr.mxu0 0.0
    %202 = vmatpush1.msra.mxu0 0.0
    %203 = vmatprep.subr.mxu0 0.0
    %204 = vmatpush1.msra.mxu0 0.0
    %205 = vmatprep.subr.mxu0 0.0
    %206 = vmatpush1.msra.mxu0 0.0
    %207 = vmatprep.subr.mxu0 0.0
    %208 = vmatpush1.msra.mxu0 0.0
    %209 = vmatprep.subr.mxu0 0.0
    %210 = vmatpush1.msra.mxu0 0.0
    %211 = vmatprep.subr.mxu0 0.0
    %212 = vmatpush1.msra.mxu0 0.0
    %213 = vmatprep.subr.mxu0 0.0
    %214 = vmatpush1.msra.mxu0 0.0
    %215 = vmatprep.mubr.f32.mxu0 0.0
    %216 = vmatmul.mubr.f32.gmra.mrb[0].mxu0 %v145
    %v217 = vpop.f32.mrb[0].mxu0
    %v218 = vadd.f32 0.0, %v217
    %v219 = vpop.f32.mrb[0].mxu0
    %220 = vdwg.mxu0
    %v221 = vxor.u32 %v218, 2147483648
    %v222 = vmul.f32 %v221, 1.442695
    %v223 = vpow.pop %v222
    %v224 = vadd.f32 %v223, 1.0
    %v225 = vrcp.pop %v224
    %v226 = vmul.f32 1.0, %v225
    %v227 = vlaneseq
    %v228 = vshrl.u32 %v227, 7
    %v229 = vsub.s32 0, %v228
    %v230 = vrot.slane %v226, %v229
    %232 = vbcast.lane.b32.xlu0 %v230, 256
    %v233 = vpop.permute.xlu0 %232
    %v234 = vlaneseq
    %v235 = vshrl.u32 %v234, 7
    %v236 = vsub.s32 1, %v235
    %v237 = vrot.slane %v226, %v236
    %239 = vbcast.lane.b32.xlu0 %v237, 256
    %v240 = vpop.permute.xlu0 %239
    %v244 = vunpack.c.l.s4 839922192
    %v245 = vunpack.c.0.s8 %v244
    %v246 = vlaneseq
    %v247 = vshrl.u32 %v246, 7
    %v248 = vsub.s32 %v245, %v247
    %v249 = vrot.slane %v233, %v248
    %v251 = vunpack.c.l.s4 839922192
    %v252 = vunpack.c.0.s8 %v251
    %v253 = vlaneseq
    %v254 = vshrl.u32 %v253, 7
    %v255 = vsub.s32 %v252, %v254
    %v256 = vrot.slane %v240, %v255
    %v259 = vmul.f32 %v29, %v249
    %v260 = vmul.f32 %v30, %v256
    %261 = vst [vmem:[#allocation5] sm:$0xff] %v259
    %262 = vst [vmem:[#allocation5 + $0x8] sm:$0xff] %v260
    // Predicated region
    $region18: #{tpu_custom_call.1} parent=1 // pred_check
      _
    $region19: #{tpu_custom_call.1} parent=1 // pred_check_branch
      %264 = sbr.rel (0) target = $region21
    $region20: #{tpu_custom_call.1} parent=1 // pred_region
      %s266 = ssub.s32 256, 256
      %267 = vsyncadd [#allocation4], %s266
      %s268 = sshll.u32 [#allocation5], 4
      %s269 = int_to_ptr.vmem [resolvable:$true] %s268
      %274 = dma.vmem_to_hbm [thread:$0]  %s269, 256, %s3, [#allocation4], 128, 128, 8
    $region21: #{tpu_custom_call.1} parent=1 // pred_fallthru
      _
    // Predicated region
    $region22: #{tpu_custom_call.1} parent=1 // pred_check
      _
    $region23: #{tpu_custom_call.1} parent=1 // pred_check_branch
      %276 = sbr.rel (0) target = $region25
    $region24: #{tpu_custom_call.1} parent=1 // pred_region
      %277 = dma.done [#allocation4], 256
    $region25: #{tpu_custom_call.1} parent=1 // pred_fallthru
      _
    %278 = vsyncpa [#allocation3], 1
    %279 = vsyncpa [#allocation4], 1

</llo_original>
